<compile_context>
chip_gen: v7x
topology: tpu7x:2x2x1
jax: 0.10.0
libtpu: 0.0.40
codegen_flags: <defaults>
</compile_context>

<pallas_src>
import functools

import jax
import jax.numpy as jnp
from jax.experimental import pallas as pl
from jax.experimental.pallas import tpu as pltpu


def _round_up(x, m):
    return ((x + m - 1) // m) * m


def _mlp_kernel(x_ref, w_ref, b_ref, o_ref, *,
                num_layers, input_size, output_size, pad):
    # x_ref: (tile, input_size) f32     w_ref: (L, pad, pad) bf16
    # b_ref: (round_up(L,8), pad) f32   o_ref: (tile, output_size) f32
    tile = x_ref.shape[0]

    # Cast to bf16 for the MXU and zero-pad features to the lane width in VMEM.
    h = x_ref[...].astype(jnp.bfloat16)
    if input_size < pad:
        h = jnp.concatenate(
            [h, jnp.zeros((tile, pad - input_size), jnp.bfloat16)], axis=-1)

    # Hidden layers: linear + sigmoid (sigmoid(z) = 0.5*(tanh(0.5*z)+1), one EUP op).
    # Zero-padded weight rows neutralize the sigmoid(0)=0.5 junk in padded columns.
    for l in range(num_layers - 1):
        z = jnp.dot(h, w_ref[l], preferred_element_type=jnp.float32)
        z = z + b_ref[pl.ds(l, 1), :]
        a = 0.5 * (jnp.tanh(0.5 * z) + 1.0)        # f32 activations (v5e-safe)
        h = a.astype(jnp.bfloat16)                 # bf16 only on MXU operands

    # Final linear layer (logits).
    logits = jnp.dot(h, w_ref[num_layers - 1], preferred_element_type=jnp.float32)
    logits = logits + b_ref[pl.ds(num_layers - 1, 1), :]

    # Mask padded logit columns with a (1, pad) iota (broadcast in the where).
    col = jax.lax.broadcasted_iota(jnp.int32, (1, pad), 1)
    logits = jnp.where(col < output_size, logits, -1e30)

    # Max-stabilized softmax; divide moved to the EUP reciprocal slot.
    m = jnp.max(logits, axis=-1, keepdims=True)
    e = jnp.exp(logits - m)
    denom = jnp.sum(e, axis=-1, keepdims=True)
    probs = e * pl.reciprocal(denom, approx=True)

    # Store only the real softmax columns (narrow output block).
    o_ref[...] = probs[:, :output_size]


def _pack_params(params, pad):
    """Pack weights into one (L, pad, pad) bf16 slab, biases into one (8k, pad) f32 slab."""
    n = len(params)
    w_slab = jnp.zeros((n, pad, pad), jnp.float32)
    b_rows = _round_up(n, 8)
    b_slab = jnp.zeros((b_rows, pad), jnp.float32)
    for l, (w, b) in enumerate(params):
        fi, fo = w.shape
        w_slab = w_slab.at[l, :fi, :fo].set(w)
        b_slab = b_slab.at[l, :fo].set(b)
    return w_slab.astype(jnp.bfloat16), b_slab


def feedforward_pallas(x, params, *, tile_b=2048):
    """x: (batch, input_size) f32; params: list of (W, b) pairs, W is (in, out)."""
    batch, input_size = x.shape
    output_size = params[-1][0].shape[1]
    num_layers = len(params)

    dims = [input_size] + [w.shape[1] for w, _ in params]
    pad = _round_up(max(dims), 128)            # lane-dense internal feature width

    w_slab, b_slab = _pack_params(params, pad)

    # Pad batch only to a sublane multiple (8); use cdiv gridding (ragged last block).
    batch_p = _round_up(batch, 8)
    if batch_p != batch:
        x = jnp.pad(x, ((0, batch_p - batch), (0, 0)))

    # Large tile to amortize per-step overhead; capped so the grid keeps >= 2 steps
    # when the batch allows it (v7x megacore sharding); always a multiple of 8.
    tile = min(tile_b, max(8, _round_up(pl.cdiv(batch_p, 2), 8)))
    grid = pl.cdiv(batch_p, tile)

    kernel = functools.partial(_mlp_kernel,
                               num_layers=num_layers,
                               input_size=input_size,
                               output_size=output_size,
                               pad=pad)

    out_p = pl.pallas_call(
        kernel,
        out_shape=jax.ShapeDtypeStruct((batch_p, output_size), jnp.float32),
        grid_spec=pltpu.PrefetchScalarGridSpec(
            num_scalar_prefetch=0,
            grid=(grid,),
            in_specs=[
                pl.BlockSpec((tile, input_size), lambda i: (i, 0)),          # x (natural width)
                pl.BlockSpec((num_layers, pad, pad), lambda i: (0, 0, 0)),   # weights (resident)
                pl.BlockSpec((b_slab.shape[0], pad), lambda i: (0, 0)),      # biases (resident)
            ],
            out_specs=pl.BlockSpec((tile, output_size), lambda i: (i, 0)),   # narrow output
        ),
        compiler_params=pltpu.CompilerParams(
            dimension_semantics=("parallel",),
            vmem_limit_bytes=32 * 1024 * 1024),
    )(x, w_slab, b_slab)

    return out_p[:batch] if batch_p != batch else out_p


def feedforward_ref(x, params):
    """Pure-JAX f32 reference of the PyTorch forward pass."""
    h = x
    for w, b in params[:-1]:
        h = jax.nn.sigmoid(h @ w + b)
    w, b = params[-1]
    return jax.nn.softmax(h @ w + b, axis=-1)


def init_params(key, input_size, output_size):
    """Deterministic init mirroring torch.nn.Linear's U(-1/sqrt(fan_in), 1/sqrt(fan_in))."""
    dims = [input_size, 10, 9, 8, 7, output_size]
    params = []
    for i in range(len(dims) - 1):
        fan_in, fan_out = dims[i], dims[i + 1]
        key, kw, kb = jax.random.split(key, 3)
        bound = 1.0 / (fan_in ** 0.5)
        w = jax.random.uniform(kw, (fan_in, fan_out), jnp.float32, -bound, bound)
        b = jax.random.uniform(kb, (fan_out,), jnp.float32, -bound, bound)
        params.append((w, b))
    return params


if __name__ == "__main__":
    key = jax.random.PRNGKey(0)
    key, kx, kx2 = jax.random.split(key, 3)

    batch = 2
    input_size = 16
    output_size = 4

    params = init_params(key, input_size, output_size)

    # Small test (single grid step).
    x = jax.random.normal(kx, (batch, input_size), jnp.float32)
    out = feedforward_pallas(x, params)
    jax.block_until_ready(out)
    assert out.shape == (batch, output_size)

    row_sums = jnp.sum(out, axis=-1)
    assert jnp.allclose(row_sums, jnp.ones_like(row_sums), atol=1e-2)
    ref = feedforward_ref(x, params)
    assert jnp.allclose(out, ref, atol=5e-2)

    # Second test exercising multiple grid steps + ragged last block + batch slice.
    batch2 = 50
    x2 = jax.random.normal(kx2, (batch2, input_size), jnp.float32)
    out2 = feedforward_pallas(x2, params, tile_b=32)
    jax.block_until_ready(out2)
    assert out2.shape == (batch2, output_size)
    ref2 = feedforward_ref(x2, params)
    assert jnp.allclose(out2, ref2, atol=5e-2)

    print("KERNEL_OK")
</pallas_src>

<mosaic_0001>
module attributes {stable_mosaic.version = 11 : i64} {
  func.func @_mlp_kernel(%arg0: i32, %arg1: memref<8x16xf32, #tpu.memory_space<vmem>>, %arg2: memref<5x128x128xbf16, #tpu.memory_space<vmem>>, %arg3: memref<8x128xf32, #tpu.memory_space<vmem>>, %arg4: memref<8x4xf32, #tpu.memory_space<vmem>>) attributes {dimension_semantics = [#tpu.dimension_semantics<parallel>], iteration_bounds = array<i64: 1>, scalar_prefetch = 0 : i64, scratch_operands = 0 : i64, tpu.core_type = #tpu.core_type<tc>, window_params = [{transform_indices = @transform_0, window_bounds = array<i64: 8, 16>}, {pipeline_mode = #tpu.pipeline_mode<synchronous>, transform_indices = @transform_1, window_bounds = array<i64: 5, 128, 128>}, {pipeline_mode = #tpu.pipeline_mode<synchronous>, transform_indices = @transform_2, window_bounds = array<i64: 8, 128>}, {transform_indices = @transform_3, window_bounds = array<i64: 8, 4>}]} {
    %c0 = arith.constant 0 : index
    %c0_0 = arith.constant 0 : index
    %0 = vector.load %arg1[%c0, %c0_0] : memref<8x16xf32, #tpu.memory_space<vmem>>, vector<8x16xf32>
    %1 = arith.truncf %0 : vector<8x16xf32> to vector<8x16xbf16>
    %cst = arith.constant 0.000000e+00 : bf16
    %2 = vector.broadcast %cst : bf16 to vector<8x112xbf16>
    %3 = tpu.concatenate %1, %2 in 1 : vector<8x16xbf16>, vector<8x112xbf16> -> vector<8x128xbf16>
    %c0_1 = arith.constant 0 : index
    %c0_2 = arith.constant 0 : index
    %c0_3 = arith.constant 0 : index
    %4 = vector.load %arg2[%c0_1, %c0_2, %c0_3] : memref<5x128x128xbf16, #tpu.memory_space<vmem>>, vector<1x128x128xbf16>
    %5 = vector.shape_cast %4 : vector<1x128x128xbf16> to vector<128x128xbf16>
    %cst_4 = arith.constant dense<0.000000e+00> : vector<8x128xf32>
    %6 = tpu.matmul %3, %5, %cst_4 {dimension_numbers = #tpu.dot_dimension_numbers<[1], [0], [0], [1], [0, 0, 1, 1], [], []>} : vector<8x128xbf16>, vector<128x128xbf16>, vector<8x128xf32> -> vector<8x128xf32>
    %c0_5 = arith.constant 0 : index
    %c0_6 = arith.constant 0 : index
    %7 = vector.load %arg3[%c0_5, %c0_6] : memref<8x128xf32, #tpu.memory_space<vmem>>, vector<1x128xf32>
    %8 = vector.broadcast %7 : vector<1x128xf32> to vector<8x128xf32>
    %9 = arith.addf %6, %8 : vector<8x128xf32>
    %cst_7 = arith.constant 5.000000e-01 : f32
    %10 = vector.broadcast %cst_7 : f32 to vector<8x128xf32>
    %11 = arith.mulf %10, %9 : vector<8x128xf32>
    %12 = math.tanh %11 : vector<8x128xf32>
    %cst_8 = arith.constant 1.000000e+00 : f32
    %13 = vector.broadcast %cst_8 : f32 to vector<8x128xf32>
    %14 = arith.addf %12, %13 : vector<8x128xf32>
    %cst_9 = arith.constant 5.000000e-01 : f32
    %15 = vector.broadcast %cst_9 : f32 to vector<8x128xf32>
    %16 = arith.mulf %15, %14 : vector<8x128xf32>
    %17 = arith.truncf %16 : vector<8x128xf32> to vector<8x128xbf16>
    %c1 = arith.constant 1 : index
    %c0_10 = arith.constant 0 : index
    %c0_11 = arith.constant 0 : index
    %18 = vector.load %arg2[%c1, %c0_10, %c0_11] : memref<5x128x128xbf16, #tpu.memory_space<vmem>>, vector<1x128x128xbf16>
    %19 = vector.shape_cast %18 : vector<1x128x128xbf16> to vector<128x128xbf16>
    %cst_12 = arith.constant dense<0.000000e+00> : vector<8x128xf32>
    %20 = tpu.matmul %17, %19, %cst_12 {dimension_numbers = #tpu.dot_dimension_numbers<[1], [0], [0], [1], [0, 0, 1, 1], [], []>} : vector<8x128xbf16>, vector<128x128xbf16>, vector<8x128xf32> -> vector<8x128xf32>
    %c1_13 = arith.constant 1 : index
    %c0_14 = arith.constant 0 : index
    %21 = vector.load %arg3[%c1_13, %c0_14] : memref<8x128xf32, #tpu.memory_space<vmem>>, vector<1x128xf32>
    %22 = vector.broadcast %21 : vector<1x128xf32> to vector<8x128xf32>
    %23 = arith.addf %20, %22 : vector<8x128xf32>
    %cst_15 = arith.constant 5.000000e-01 : f32
    %24 = vector.broadcast %cst_15 : f32 to vector<8x128xf32>
    %25 = arith.mulf %24, %23 : vector<8x128xf32>
    %26 = math.tanh %25 : vector<8x128xf32>
    %cst_16 = arith.constant 1.000000e+00 : f32
    %27 = vector.broadcast %cst_16 : f32 to vector<8x128xf32>
    %28 = arith.addf %26, %27 : vector<8x128xf32>
    %cst_17 = arith.constant 5.000000e-01 : f32
    %29 = vector.broadcast %cst_17 : f32 to vector<8x128xf32>
    %30 = arith.mulf %29, %28 : vector<8x128xf32>
    %31 = arith.truncf %30 : vector<8x128xf32> to vector<8x128xbf16>
    %c2 = arith.constant 2 : index
    %c0_18 = arith.constant 0 : index
    %c0_19 = arith.constant 0 : index
    %32 = vector.load %arg2[%c2, %c0_18, %c0_19] : memref<5x128x128xbf16, #tpu.memory_space<vmem>>, vector<1x128x128xbf16>
    %33 = vector.shape_cast %32 : vector<1x128x128xbf16> to vector<128x128xbf16>
    %cst_20 = arith.constant dense<0.000000e+00> : vector<8x128xf32>
    %34 = tpu.matmul %31, %33, %cst_20 {dimension_numbers = #tpu.dot_dimension_numbers<[1], [0], [0], [1], [0, 0, 1, 1], [], []>} : vector<8x128xbf16>, vector<128x128xbf16>, vector<8x128xf32> -> vector<8x128xf32>
    %c2_21 = arith.constant 2 : index
    %c0_22 = arith.constant 0 : index
    %35 = vector.load %arg3[%c2_21, %c0_22] : memref<8x128xf32, #tpu.memory_space<vmem>>, vector<1x128xf32>
    %36 = vector.broadcast %35 : vector<1x128xf32> to vector<8x128xf32>
    %37 = arith.addf %34, %36 : vector<8x128xf32>
    %cst_23 = arith.constant 5.000000e-01 : f32
    %38 = vector.broadcast %cst_23 : f32 to vector<8x128xf32>
    %39 = arith.mulf %38, %37 : vector<8x128xf32>
    %40 = math.tanh %39 : vector<8x128xf32>
    %cst_24 = arith.constant 1.000000e+00 : f32
    %41 = vector.broadcast %cst_24 : f32 to vector<8x128xf32>
    %42 = arith.addf %40, %41 : vector<8x128xf32>
    %cst_25 = arith.constant 5.000000e-01 : f32
    %43 = vector.broadcast %cst_25 : f32 to vector<8x128xf32>
    %44 = arith.mulf %43, %42 : vector<8x128xf32>
    %45 = arith.truncf %44 : vector<8x128xf32> to vector<8x128xbf16>
    %c3 = arith.constant 3 : index
    %c0_26 = arith.constant 0 : index
    %c0_27 = arith.constant 0 : index
    %46 = vector.load %arg2[%c3, %c0_26, %c0_27] : memref<5x128x128xbf16, #tpu.memory_space<vmem>>, vector<1x128x128xbf16>
    %47 = vector.shape_cast %46 : vector<1x128x128xbf16> to vector<128x128xbf16>
    %cst_28 = arith.constant dense<0.000000e+00> : vector<8x128xf32>
    %48 = tpu.matmul %45, %47, %cst_28 {dimension_numbers = #tpu.dot_dimension_numbers<[1], [0], [0], [1], [0, 0, 1, 1], [], []>} : vector<8x128xbf16>, vector<128x128xbf16>, vector<8x128xf32> -> vector<8x128xf32>
    %c3_29 = arith.constant 3 : index
    %c0_30 = arith.constant 0 : index
    %49 = vector.load %arg3[%c3_29, %c0_30] : memref<8x128xf32, #tpu.memory_space<vmem>>, vector<1x128xf32>
    %50 = vector.broadcast %49 : vector<1x128xf32> to vector<8x128xf32>
    %51 = arith.addf %48, %50 : vector<8x128xf32>
    %cst_31 = arith.constant 5.000000e-01 : f32
    %52 = vector.broadcast %cst_31 : f32 to vector<8x128xf32>
    %53 = arith.mulf %52, %51 : vector<8x128xf32>
    %54 = math.tanh %53 : vector<8x128xf32>
    %cst_32 = arith.constant 1.000000e+00 : f32
    %55 = vector.broadcast %cst_32 : f32 to vector<8x128xf32>
    %56 = arith.addf %54, %55 : vector<8x128xf32>
    %cst_33 = arith.constant 5.000000e-01 : f32
    %57 = vector.broadcast %cst_33 : f32 to vector<8x128xf32>
    %58 = arith.mulf %57, %56 : vector<8x128xf32>
    %59 = arith.truncf %58 : vector<8x128xf32> to vector<8x128xbf16>
    %c4 = arith.constant 4 : index
    %c0_34 = arith.constant 0 : index
    %c0_35 = arith.constant 0 : index
    %60 = vector.load %arg2[%c4, %c0_34, %c0_35] : memref<5x128x128xbf16, #tpu.memory_space<vmem>>, vector<1x128x128xbf16>
    %61 = vector.shape_cast %60 : vector<1x128x128xbf16> to vector<128x128xbf16>
    %cst_36 = arith.constant dense<0.000000e+00> : vector<8x128xf32>
    %62 = tpu.matmul %59, %61, %cst_36 {dimension_numbers = #tpu.dot_dimension_numbers<[1], [0], [0], [1], [0, 0, 1, 1], [], []>} : vector<8x128xbf16>, vector<128x128xbf16>, vector<8x128xf32> -> vector<8x128xf32>
    %c4_37 = arith.constant 4 : index
    %c0_38 = arith.constant 0 : index
    %63 = vector.load %arg3[%c4_37, %c0_38] : memref<8x128xf32, #tpu.memory_space<vmem>>, vector<1x128xf32>
    %64 = vector.broadcast %63 : vector<1x128xf32> to vector<8x128xf32>
    %65 = arith.addf %62, %64 : vector<8x128xf32>
    %66 = tpu.iota {dimensions = array<i32: 1>} : vector<1x128xi32>
    %c4_i32 = arith.constant 4 : i32
    %67 = vector.broadcast %c4_i32 : i32 to vector<1x128xi32>
    %68 = arith.cmpi slt, %66, %67 : vector<1x128xi32>
    %cst_39 = arith.constant -1.000000e+30 : f32
    %69 = vector.shape_cast %68 : vector<1x128xi1> to vector<1x128xi1>
    %70 = vector.broadcast %69 : vector<1x128xi1> to vector<8x128xi1>
    %71 = vector.broadcast %cst_39 : f32 to vector<8x128xf32>
    %72 = arith.select %70, %65, %71 : vector<8x128xi1>, vector<8x128xf32>
    %cst_40 = arith.constant dense<0xFF800000> : vector<8xf32>
    %73 = vector.multi_reduction <maximumf>, %72, %cst_40 [1] : vector<8x128xf32> to vector<8xf32>
    %74 = vector.shape_cast %73 : vector<8xf32> to vector<8x1xf32>
    %75 = vector.broadcast %74 : vector<8x1xf32> to vector<8x128xf32>
    %76 = arith.subf %72, %75 : vector<8x128xf32>
    %77 = math.exp %76 : vector<8x128xf32>
    %cst_41 = arith.constant dense<0.000000e+00> : vector<8xf32>
    %78 = vector.multi_reduction <add>, %77, %cst_41 [1] : vector<8x128xf32> to vector<8xf32>
    %79 = vector.shape_cast %78 : vector<8xf32> to vector<8x1xf32>
    %80 = tpu.reciprocal %79 {approx = true} : vector<8x1xf32> -> vector<8x1xf32>
    %81 = vector.broadcast %80 : vector<8x1xf32> to vector<8x128xf32>
    %82 = arith.mulf %77, %81 : vector<8x128xf32>
    %83 = vector.extract_strided_slice %82 {offsets = [0, 0], sizes = [8, 4], strides = [1, 1]} : vector<8x128xf32> to vector<8x4xf32>
    %c0_42 = arith.constant 0 : index
    %c0_43 = arith.constant 0 : index
    %84 = vector.load %arg4[%c0_42, %c0_43] : memref<8x4xf32, #tpu.memory_space<vmem>>, vector<8x4xf32>
    tpu.vector_store %arg4[%c0_42, %c0_43], %83 {strides = array<i32>} : memref<8x4xf32, #tpu.memory_space<vmem>>, vector<8x4xf32>,
    return
  }
  func.func @transform_0(%arg0: i32) -> (i32, i32) {
    %c0_i32 = arith.constant 0 : i32
    %c0_i32_0 = arith.constant 0 : i32
    return %arg0, %c0_i32 : i32, i32
  }
  func.func @transform_1(%arg0: i32) -> (i32, i32, i32) {
    %c0_i32 = arith.constant 0 : i32
    %c0_i32_0 = arith.constant 0 : i32
    %c0_i32_1 = arith.constant 0 : i32
    %c0_i32_2 = arith.constant 0 : i32
    return %c0_i32, %c0_i32_0, %c0_i32_1 : i32, i32, i32
  }
  func.func @transform_2(%arg0: i32) -> (i32, i32) {
    %c0_i32 = arith.constant 0 : i32
    %c0_i32_0 = arith.constant 0 : i32
    %c0_i32_1 = arith.constant 0 : i32
    return %c0_i32, %c0_i32_0 : i32, i32
  }
  func.func @transform_3(%arg0: i32) -> (i32, i32) {
    %c0_i32 = arith.constant 0 : i32
    %c0_i32_0 = arith.constant 0 : i32
    return %arg0, %c0_i32 : i32, i32
  }
}

</mosaic_0001>

<llo_original>
// kernel: tpu_custom_call.1
$region0: #{tpu_custom_call.1}
  #allocation0 [shape = 'u32[]', space=smem, size = 0x4, offset = 0x4, fixed_abs, tag = 'smem constant byte address 0x4 - core index']
  #allocation1 [shape = 'u32[144,128]{1,0:T(1,128)}', space=vmem, size = 0x12000, scoped, tag = 'internal scratch']
  %s0 = inlined_call_operand.hbm [shape: f32[8,16], index: 0, kind: input, shape index: {}]
  %s1 = inlined_call_operand.hbm [shape: bf16[5,128,128], index: 1, kind: input, shape index: {}]
  %s2 = inlined_call_operand.hbm [shape: f32[8,128], index: 2, kind: input, shape index: {}]
  %s3 = inlined_call_operand.vmem [shape: f32[8,4], index: 3, kind: output, shape index: {}]
  %s4 = sld [smem:[#allocation0]]
  $region34: #{tpu_custom_call.1} parent=0
    _
  %s6 = ssub.s32 1, %s4
  %s7 = scalar_select 0, %s6, %s4
  $region1: #{tpu_custom_call.1} parent=0
    #allocation2 [shape = 'u8[4096]{0}', space=vmem, size = 0x1000, scoped, tag = 'input window, operand 0, single buffered']
    #allocation3 [shape = 's32[1]{0}', space=sflag, size = 0x4, scoped, tag = 'scoped memory for tpu_custom_call.1']
    #allocation4 [shape = 'u8[163840]{0}', space=vmem, size = 0x28000, scoped, tag = 'input window, operand 1, single buffered']
    #allocation5 [shape = 's32[1]{0}', space=sflag, size = 0x4, scoped, tag = 'scoped memory for tpu_custom_call.1']
    #allocation6 [shape = 'u8[4096]{0}', space=vmem, size = 0x1000, scoped, tag = 'input window, operand 2, single buffered']
    %8 = vsyncpa [#allocation3], 0
    %9 = vsyncpa [#allocation5], 0
    // Predicated region
    $region2: #{tpu_custom_call.1} parent=1 // pred_check
      _
    $region3: #{tpu_custom_call.1} parent=1 // pred_check_branch
      %11 = sbr.rel (0) target = $region5
    $region4: #{tpu_custom_call.1} parent=1 // pred_region
      %s13 = ssub.s32 128, 128
      %14 = vsyncadd [#allocation3], %s13
      %s16 = sshll.u32 [#allocation2], 4
      %s17 = int_to_ptr.vmem [resolvable:$true] %s16
      %19 = dma.hbm_to_vmem [thread:$0]  %s0, 128, %s17, [#allocation3]
    $region5: #{tpu_custom_call.1} parent=1 // pred_fallthru
      _
    // Predicated region
    $region6: #{tpu_custom_call.1} parent=1 // pred_check
      _
    $region7: #{tpu_custom_call.1} parent=1 // pred_check_branch
      %21 = sbr.rel (0) target = $region9
    $region8: #{tpu_custom_call.1} parent=1 // pred_region
      %s23 = ssub.s32 5120, 5120
      %24 = vsyncadd [#allocation5], %s23
      %s25 = sshll.u32 [#allocation4], 4
      %s26 = int_to_ptr.vmem [resolvable:$true] %s25
      %31 = dma.hbm_to_vmem [thread:$0]  %s1, 5120, %s26, [#allocation5], 64, 64, 4
    $region9: #{tpu_custom_call.1} parent=1 // pred_fallthru
      _
    // Predicated region
    $region10: #{tpu_custom_call.1} parent=1 // pred_check
      _
    $region11: #{tpu_custom_call.1} parent=1 // pred_check_branch
      %33 = sbr.rel (0) target = $region13
    $region12: #{tpu_custom_call.1} parent=1 // pred_region
      %s35 = ssub.s32 128, 128
      %36 = vsyncadd [#allocation5], %s35
      %s38 = sshll.u32 [#allocation6], 4
      %s39 = int_to_ptr.vmem [resolvable:$true] %s38
      %41 = dma.hbm_to_vmem [thread:$0]  %s2, 128, %s39, [#allocation5]
    $region13: #{tpu_custom_call.1} parent=1 // pred_fallthru
      _
    // Predicated region
    $region14: #{tpu_custom_call.1} parent=1 // pred_check
      _
    $region15: #{tpu_custom_call.1} parent=1 // pred_check_branch
      %43 = sbr.rel (0) target = $region17
    $region16: #{tpu_custom_call.1} parent=1 // pred_region
      %44 = dma.done [#allocation3], 128
    $region17: #{tpu_custom_call.1} parent=1 // pred_fallthru
      _
    // Predicated region
    $region18: #{tpu_custom_call.1} parent=1 // pred_check
      _
    $region19: #{tpu_custom_call.1} parent=1 // pred_check_branch
      %46 = sbr.rel (0) target = $region21
    $region20: #{tpu_custom_call.1} parent=1 // pred_region
      %47 = dma.done [#allocation5], 5120
    $region21: #{tpu_custom_call.1} parent=1 // pred_fallthru
      _
    // Predicated region
    $region22: #{tpu_custom_call.1} parent=1 // pred_check
      _
    $region23: #{tpu_custom_call.1} parent=1 // pred_check_branch
      %49 = sbr.rel (0) target = $region25
    $region24: #{tpu_custom_call.1} parent=1 // pred_region
      %50 = dma.done [#allocation5], 128
    $region25: #{tpu_custom_call.1} parent=1 // pred_fallthru
      _
    %v52 = vld [vmem:[#allocation2] sm:$0xff]
    %v53 = vpack.c.bf16 %v52, %v52
    %vm54 = vcmask 130048
    %v57 = vsel %vm54, %v53, 0
    %v59 = vld [vmem:[#allocation4] sm:$0xf]
    %v60 = vld [vmem:[#allocation4 + $0x4] sm:$0xf]
    %v61 = vld [vmem:[#allocation4 + $0x8] sm:$0xf]
    %v62 = vld [vmem:[#allocation4 + $0xc] sm:$0xf]
    %v63 = vld [vmem:[#allocation4 + $0x10] sm:$0xf]
    %v64 = vld [vmem:[#allocation4 + $0x14] sm:$0xf]
    %v65 = vld [vmem:[#allocation4 + $0x18] sm:$0xf]
    %v66 = vld [vmem:[#allocation4 + $0x1c] sm:$0xf]
    %v67 = vld [vmem:[#allocation4 + $0x20] sm:$0xf]
    %v68 = vld [vmem:[#allocation4 + $0x24] sm:$0xf]
    %v69 = vld [vmem:[#allocation4 + $0x28] sm:$0xf]
    %v70 = vld [vmem:[#allocation4 + $0x2c] sm:$0xf]
    %v71 = vld [vmem:[#allocation4 + $0x30] sm:$0xf]
    %v72 = vld [vmem:[#allocation4 + $0x34] sm:$0xf]
    %v73 = vld [vmem:[#allocation4 + $0x38] sm:$0xf]
    %v74 = vld [vmem:[#allocation4 + $0x3c] sm:$0xf]
    %v75 = vld [vmem:[#allocation6] sm:$0x1]
    %v76 = vlaneseq
    %v77 = vshrl.u32 %v76, 7
    %v78 = vsub.s32 0, %v77
    %v79 = vrot.slane %v75, %v78
    %v96 = vunpack.c.l.b16 %v59
    %v97 = vunpack.c.l.b16 %v60
    %v98 = vunpack.c.l.b16 %v61
    %v99 = vunpack.c.l.b16 %v62
    %v100 = vunpack.c.l.b16 %v63
    %v101 = vunpack.c.l.b16 %v64
    %v102 = vunpack.c.l.b16 %v65
    %v103 = vunpack.c.l.b16 %v66
    %v104 = vunpack.c.l.b16 %v67
    %v105 = vunpack.c.l.b16 %v68
    %v106 = vunpack.c.l.b16 %v69
    %v107 = vunpack.c.l.b16 %v70
    %v108 = vunpack.c.l.b16 %v71
    %v109 = vunpack.c.l.b16 %v72
    %v110 = vunpack.c.l.b16 %v73
    %v111 = vunpack.c.l.b16 %v74
    %v112 = vpack.c.b16 %v97, %v96
    %v113 = vpack.c.b16 %v99, %v98
    %v114 = vpack.c.b16 %v101, %v100
    %v115 = vpack.c.b16 %v103, %v102
    %v116 = vpack.c.b16 %v105, %v104
    %v117 = vpack.c.b16 %v107, %v106
    %v118 = vpack.c.b16 %v109, %v108
    %v119 = vpack.c.b16 %v111, %v110
    %128 = vmatprep.subr.bf16.mxu0 0
    %129 = vmatpush1.bf16.msra.mxu0 %v112
    %130 = vmatprep.subr.bf16.mxu0 0
    %131 = vmatpush1.bf16.msra.mxu0 %v113
    %132 = vmatprep.subr.bf16.mxu0 0
    %133 = vmatpush1.bf16.msra.mxu0 %v114
    %134 = vmatprep.subr.bf16.mxu0 0
    %135 = vmatpush1.bf16.msra.mxu0 %v115
    %136 = vmatprep.subr.bf16.mxu0 0
    %137 = vmatpush1.bf16.msra.mxu0 %v116
    %138 = vmatprep.subr.bf16.mxu0 0
    %139 = vmatpush1.bf16.msra.mxu0 %v117
    %140 = vmatprep.subr.bf16.mxu0 0
    %141 = vmatpush1.bf16.msra.mxu0 %v118
    %142 = vmatprep.subr.bf16.mxu0 0
    %143 = vmatpush1.bf16.msra.mxu0 %v119
    %144 = vmatprep.subr.bf16.mxu0 0
    %145 = vmatpush1.bf16.msra.mxu0 0
    %146 = vmatprep.subr.bf16.mxu0 0
    %147 = vmatpush1.bf16.msra.mxu0 0
    %148 = vmatprep.subr.bf16.mxu0 0
    %149 = vmatpush1.bf16.msra.mxu0 0
    %150 = vmatprep.subr.bf16.mxu0 0
    %151 = vmatpush1.bf16.msra.mxu0 0
    %152 = vmatprep.subr.bf16.mxu0 0
    %153 = vmatpush1.bf16.msra.mxu0 0
    %154 = vmatprep.subr.bf16.mxu0 0
    %155 = vmatpush1.bf16.msra.mxu0 0
    %156 = vmatprep.subr.bf16.mxu0 0
    %157 = vmatpush1.bf16.msra.mxu0 0
    %158 = vmatprep.subr.bf16.mxu0 0
    %159 = vmatpush1.bf16.msra.mxu0 0
    %160 = vmatprep.mubr.bf16.mxu0 0
    %161 = vmatmul.mubr.bf16.gmra.mrb[0].mxu0 %v57
    %v162 = vpop.f32.mrb[0].mxu0
    %v163 = vadd.f32 %v79, %v162
    %v164 = vpop.f32.mrb[0].mxu0
    %v165 = vpop.f32.mrb[0].mxu0
    %v166 = vpop.f32.mrb[0].mxu0
    %167 = vdwg.mxu0
    %v168 = vmul.f32 %v163, 0.5
    %v169 = vtanh.pop %v168
    %v170 = vadd.f32 %v169, 1.0
    %v171 = vmul.f32 %v170, 0.5
    %v172 = vpack.c.bf16 %v171, %v171
    %s173 = scalar_lea.vmem [#allocation4], 64
    %v174 = vld [vmem:[%s173] sm:$0xf]
    %v175 = vld [vmem:[%s173 + $0x4] sm:$0xf]
    %v176 = vld [vmem:[%s173 + $0x8] sm:$0xf]
    %v177 = vld [vmem:[%s173 + $0xc] sm:$0xf]
    %v178 = vld [vmem:[%s173 + $0x10] sm:$0xf]
    %v179 = vld [vmem:[%s173 + $0x14] sm:$0xf]
    %v180 = vld [vmem:[%s173 + $0x18] sm:$0xf]
    %v181 = vld [vmem:[%s173 + $0x1c] sm:$0xf]
    %v182 = vld [vmem:[%s173 + $0x20] sm:$0xf]
    %v183 = vld [vmem:[%s173 + $0x24] sm:$0xf]
    %v184 = vld [vmem:[%s173 + $0x28] sm:$0xf]
    %v185 = vld [vmem:[%s173 + $0x2c] sm:$0xf]
    %v186 = vld [vmem:[%s173 + $0x30] sm:$0xf]
    %v187 = vld [vmem:[%s173 + $0x34] sm:$0xf]
    %v188 = vld [vmem:[%s173 + $0x38] sm:$0xf]
    %v189 = vld [vmem:[%s173 + $0x3c] sm:$0xf]
    %v190 = vld [vmem:[#allocation6 + $0x1] sm:$0x1]
    %v191 = vlaneseq
    %v192 = vshrl.u32 %v191, 7
    %v193 = vsub.s32 0, %v192
    %v194 = vrot.slane %v190, %v193
    %v211 = vunpack.c.l.b16 %v174
    %v212 = vunpack.c.l.b16 %v175
    %v213 = vunpack.c.l.b16 %v176
    %v214 = vunpack.c.l.b16 %v177
    %v215 = vunpack.c.l.b16 %v178
    %v216 = vunpack.c.l.b16 %v179
    %v217 = vunpack.c.l.b16 %v180
    %v218 = vunpack.c.l.b16 %v181
    %v219 = vunpack.c.l.b16 %v182
    %v220 = vunpack.c.l.b16 %v183
    %v221 = vunpack.c.l.b16 %v184
    %v222 = vunpack.c.l.b16 %v185
    %v223 = vunpack.c.l.b16 %v186
    %v224 = vunpack.c.l.b16 %v187
    %v225 = vunpack.c.l.b16 %v188
    %v226 = vunpack.c.l.b16 %v189
    %v227 = vpack.c.b16 %v212, %v211
    %v228 = vpack.c.b16 %v214, %v213
    %v229 = vpack.c.b16 %v216, %v215
    %v230 = vpack.c.b16 %v218, %v217
    %v231 = vpack.c.b16 %v220, %v219
    %v232 = vpack.c.b16 %v222, %v221
    %v233 = vpack.c.b16 %v224, %v223
    %v234 = vpack.c.b16 %v226, %v225
    %243 = vmatprep.subr.bf16.mxu0 0
    %244 = vmatpush1.bf16.msra.mxu0 %v227
    %245 = vmatprep.subr.bf16.mxu0 0
    %246 = vmatpush1.bf16.msra.mxu0 %v228
    %247 = vmatprep.subr.bf16.mxu0 0
    %248 = vmatpush1.bf16.msra.mxu0 %v229
    %249 = vmatprep.subr.bf16.mxu0 0
    %250 = vmatpush1.bf16.msra.mxu0 %v230
    %251 = vmatprep.subr.bf16.mxu0 0
    %252 = vmatpush1.bf16.msra.mxu0 %v231
    %253 = vmatprep.subr.bf16.mxu0 0
    %254 = vmatpush1.bf16.msra.mxu0 %v232
    %255 = vmatprep.subr.bf16.mxu0 0
    %256 = vmatpush1.bf16.msra.mxu0 %v233
    %257 = vmatprep.subr.bf16.mxu0 0
    %258 = vmatpush1.bf16.msra.mxu0 %v234
    %259 = vmatprep.subr.bf16.mxu0 0
    %260 = vmatpush1.bf16.msra.mxu0 0
    %261 = vmatprep.subr.bf16.mxu0 0
    %262 = vmatpush1.bf16.msra.mxu0 0
    %263 = vmatprep.subr.bf16.mxu0 0
    %264 = vmatpush1.bf16.msra.mxu0 0
    %265 = vmatprep.subr.bf16.mxu0 0
    %266 = vmatpush1.bf16.msra.mxu0 0
    %267 = vmatprep.subr.bf16.mxu0 0
    %268 = vmatpush1.bf16.msra.mxu0 0
    %269 = vmatprep.subr.bf16.mxu0 0
    %270 = vmatpush1.bf16.msra.mxu0 0
    %271 = vmatprep.subr.bf16.mxu0 0
    %272 = vmatpush1.bf16.msra.mxu0 0
    %273 = vmatprep.subr.bf16.mxu0 0
    %274 = vmatpush1.bf16.msra.mxu0 0
    %275 = vmatprep.mubr.bf16.mxu0 0
    %276 = vmatmul.mubr.bf16.gmra.mrb[0].mxu0 %v172
    %v277 = vpop.f32.mrb[0].mxu0
    %v278 = vadd.f32 %v194, %v277
    %v279 = vpop.f32.mrb[0].mxu0
    %v280 = vpop.f32.mrb[0].mxu0
    %v281 = vpop.f32.mrb[0].mxu0
    %282 = vdwg.mxu0
    %v283 = vmul.f32 %v278, 0.5
    %v284 = vtanh.pop %v283
    %v285 = vadd.f32 %v284, 1.0
    %v286 = vmul.f32 %v285, 0.5
    %v287 = vpack.c.bf16 %v286, %v286
    %s288 = scalar_lea.vmem [#allocation4], 128
    %v289 = vld [vmem:[%s288] sm:$0xf]
    %v290 = vld [vmem:[%s288 + $0x4] sm:$0xf]
    %v291 = vld [vmem:[%s288 + $0x8] sm:$0xf]
    %v292 = vld [vmem:[%s288 + $0xc] sm:$0xf]
    %v293 = vld [vmem:[%s288 + $0x10] sm:$0xf]
    %v294 = vld [vmem:[%s288 + $0x14] sm:$0xf]
    %v295 = vld [vmem:[%s288 + $0x18] sm:$0xf]
    %v296 = vld [vmem:[%s288 + $0x1c] sm:$0xf]
    %v297 = vld [vmem:[%s288 + $0x20] sm:$0xf]
    %v298 = vld [vmem:[%s288 + $0x24] sm:$0xf]
    %v299 = vld [vmem:[%s288 + $0x28] sm:$0xf]
    %v300 = vld [vmem:[%s288 + $0x2c] sm:$0xf]
    %v301 = vld [vmem:[%s288 + $0x30] sm:$0xf]
    %v302 = vld [vmem:[%s288 + $0x34] sm:$0xf]
    %v303 = vld [vmem:[%s288 + $0x38] sm:$0xf]
    %v304 = vld [vmem:[%s288 + $0x3c] sm:$0xf]
    %v305 = vld [vmem:[#allocation6 + $0x2] sm:$0x1]
    %v306 = vlaneseq
    %v307 = vshrl.u32 %v306, 7
    %v308 = vsub.s32 0, %v307
    %v309 = vrot.slane %v305, %v308
    %v326 = vunpack.c.l.b16 %v289
    %v327 = vunpack.c.l.b16 %v290
    %v328 = vunpack.c.l.b16 %v291
    %v329 = vunpack.c.l.b16 %v292
    %v330 = vunpack.c.l.b16 %v293
    %v331 = vunpack.c.l.b16 %v294
    %v332 = vunpack.c.l.b16 %v295
    %v333 = vunpack.c.l.b16 %v296
    %v334 = vunpack.c.l.b16 %v297
    %v335 = vunpack.c.l.b16 %v298
    %v336 = vunpack.c.l.b16 %v299
    %v337 = vunpack.c.l.b16 %v300
    %v338 = vunpack.c.l.b16 %v301
    %v339 = vunpack.c.l.b16 %v302
    %v340 = vunpack.c.l.b16 %v303
    %v341 = vunpack.c.l.b16 %v304
    %v342 = vpack.c.b16 %v327, %v326
    %v343 = vpack.c.b16 %v329, %v328
    %v344 = vpack.c.b16 %v331, %v330
    %v345 = vpack.c.b16 %v333, %v332
    %v346 = vpack.c.b16 %v335, %v334
    %v347 = vpack.c.b16 %v337, %v336
    %v348 = vpack.c.b16 %v339, %v338
    %v349 = vpack.c.b16 %v341, %v340
    %358 = vmatprep.subr.bf16.mxu0 0
    %359 = vmatpush1.bf16.msra.mxu0 %v342
    %360 = vmatprep.subr.bf16.mxu0 0
    %361 = vmatpush1.bf16.msra.mxu0 %v343
    %362 = vmatprep.subr.bf16.mxu0 0
    %363 = vmatpush1.bf16.msra.mxu0 %v344
    %364 = vmatprep.subr.bf16.mxu0 0
    %365 = vmatpush1.bf16.msra.mxu0 %v345
    %366 = vmatprep.subr.bf16.mxu0 0
    %367 = vmatpush1.bf16.msra.mxu0 %v346
    %368 = vmatprep.subr.bf16.mxu0 0
    %369 = vmatpush1.bf16.msra.mxu0 %v347
    %370 = vmatprep.subr.bf16.mxu0 0
    %371 = vmatpush1.bf16.msra.mxu0 %v348
    %372 = vmatprep.subr.bf16.mxu0 0
    %373 = vmatpush1.bf16.msra.mxu0 %v349
    %374 = vmatprep.subr.bf16.mxu0 0
    %375 = vmatpush1.bf16.msra.mxu0 0
    %376 = vmatprep.subr.bf16.mxu0 0
    %377 = vmatpush1.bf16.msra.mxu0 0
    %378 = vmatprep.subr.bf16.mxu0 0
    %379 = vmatpush1.bf16.msra.mxu0 0
    %380 = vmatprep.subr.bf16.mxu0 0
    %381 = vmatpush1.bf16.msra.mxu0 0
    %382 = vmatprep.subr.bf16.mxu0 0
    %383 = vmatpush1.bf16.msra.mxu0 0
    %384 = vmatprep.subr.bf16.mxu0 0
    %385 = vmatpush1.bf16.msra.mxu0 0
    %386 = vmatprep.subr.bf16.mxu0 0
    %387 = vmatpush1.bf16.msra.mxu0 0
    %388 = vmatprep.subr.bf16.mxu0 0
    %389 = vmatpush1.bf16.msra.mxu0 0
    %390 = vmatprep.mubr.bf16.mxu0 0
    %391 = vmatmul.mubr.bf16.gmra.mrb[0].mxu0 %v287
    %v392 = vpop.f32.mrb[0].mxu0
    %v393 = vadd.f32 %v309, %v392
    %v394 = vpop.f32.mrb[0].mxu0
    %v395 = vpop.f32.mrb[0].mxu0
    %v396 = vpop.f32.mrb[0].mxu0
    %397 = vdwg.mxu0
    %v398 = vmul.f32 %v393, 0.5
    %v399 = vtanh.pop %v398
    %v400 = vadd.f32 %v399, 1.0
    %v401 = vmul.f32 %v400, 0.5
    %v402 = vpack.c.bf16 %v401, %v401
    %s403 = scalar_lea.vmem [#allocation4], 192
    %v404 = vld [vmem:[%s403] sm:$0xf]
    %v405 = vld [vmem:[%s403 + $0x4] sm:$0xf]
    %v406 = vld [vmem:[%s403 + $0x8] sm:$0xf]
    %v407 = vld [vmem:[%s403 + $0xc] sm:$0xf]
    %v408 = vld [vmem:[%s403 + $0x10] sm:$0xf]
    %v409 = vld [vmem:[%s403 + $0x14] sm:$0xf]
    %v410 = vld [vmem:[%s403 + $0x18] sm:$0xf]
    %v411 = vld [vmem:[%s403 + $0x1c] sm:$0xf]
    %v412 = vld [vmem:[%s403 + $0x20] sm:$0xf]
    %v413 = vld [vmem:[%s403 + $0x24] sm:$0xf]
    %v414 = vld [vmem:[%s403 + $0x28] sm:$0xf]
    %v415 = vld [vmem:[%s403 + $0x2c] sm:$0xf]
    %v416 = vld [vmem:[%s403 + $0x30] sm:$0xf]
    %v417 = vld [vmem:[%s403 + $0x34] sm:$0xf]
    %v418 = vld [vmem:[%s403 + $0x38] sm:$0xf]
    %v419 = vld [vmem:[%s403 + $0x3c] sm:$0xf]
    %v420 = vld [vmem:[#allocation6 + $0x3] sm:$0x1]
    %v421 = vlaneseq
    %v422 = vshrl.u32 %v421, 7
    %v423 = vsub.s32 0, %v422
    %v424 = vrot.slane %v420, %v423
    %v441 = vunpack.c.l.b16 %v404
    %v442 = vunpack.c.l.b16 %v405
    %v443 = vunpack.c.l.b16 %v406
    %v444 = vunpack.c.l.b16 %v407
    %v445 = vunpack.c.l.b16 %v408
    %v446 = vunpack.c.l.b16 %v409
    %v447 = vunpack.c.l.b16 %v410
    %v448 = vunpack.c.l.b16 %v411
    %v449 = vunpack.c.l.b16 %v412
    %v450 = vunpack.c.l.b16 %v413
    %v451 = vunpack.c.l.b16 %v414
    %v452 = vunpack.c.l.b16 %v415
    %v453 = vunpack.c.l.b16 %v416
    %v454 = vunpack.c.l.b16 %v417
    %v455 = vunpack.c.l.b16 %v418
    %v456 = vunpack.c.l.b16 %v419
    %v457 = vpack.c.b16 %v442, %v441
    %v458 = vpack.c.b16 %v444, %v443
    %v459 = vpack.c.b16 %v446, %v445
    %v460 = vpack.c.b16 %v448, %v447
    %v461 = vpack.c.b16 %v450, %v449
    %v462 = vpack.c.b16 %v452, %v451
    %v463 = vpack.c.b16 %v454, %v453
    %v464 = vpack.c.b16 %v456, %v455
    %473 = vmatprep.subr.bf16.mxu0 0
    %474 = vmatpush1.bf16.msra.mxu0 %v457
    %475 = vmatprep.subr.bf16.mxu0 0
    %476 = vmatpush1.bf16.msra.mxu0 %v458
    %477 = vmatprep.subr.bf16.mxu0 0
    %478 = vmatpush1.bf16.msra.mxu0 %v459
    %479 = vmatprep.subr.bf16.mxu0 0
    %480 = vmatpush1.bf16.msra.mxu0 %v460
    %481 = vmatprep.subr.bf16.mxu0 0
    %482 = vmatpush1.bf16.msra.mxu0 %v461
    %483 = vmatprep.subr.bf16.mxu0 0
    %484 = vmatpush1.bf16.msra.mxu0 %v462
    %485 = vmatprep.subr.bf16.mxu0 0
    %486 = vmatpush1.bf16.msra.mxu0 %v463
    %487 = vmatprep.subr.bf16.mxu0 0
    %488 = vmatpush1.bf16.msra.mxu0 %v464
    %489 = vmatprep.subr.bf16.mxu0 0
    %490 = vmatpush1.bf16.msra.mxu0 0
    %491 = vmatprep.subr.bf16.mxu0 0
    %492 = vmatpush1.bf16.msra.mxu0 0
    %493 = vmatprep.subr.bf16.mxu0 0
    %494 = vmatpush1.bf16.msra.mxu0 0
    %495 = vmatprep.subr.bf16.mxu0 0
    %496 = vmatpush1.bf16.msra.mxu0 0
    %497 = vmatprep.subr.bf16.mxu0 0
    %498 = vmatpush1.bf16.msra.mxu0 0
    %499 = vmatprep.subr.bf16.mxu0 0
    %500 = vmatpush1.bf16.msra.mxu0 0
    %501 = vmatprep.subr.bf16.mxu0 0
    %502 = vmatpush1.bf16.msra.mxu0 0
    %503 = vmatprep.subr.bf16.mxu0 0
    %504 = vmatpush1.bf16.msra.mxu0 0
    %505 = vmatprep.mubr.bf16.mxu0 0
    %506 = vmatmul.mubr.bf16.gmra.mrb[0].mxu0 %v402
    %v507 = vpop.f32.mrb[0].mxu0
    %v508 = vadd.f32 %v424, %v507
    %v509 = vpop.f32.mrb[0].mxu0
    %v510 = vpop.f32.mrb[0].mxu0
    %v511 = vpop.f32.mrb[0].mxu0
    %512 = vdwg.mxu0
    %v513 = vmul.f32 %v508, 0.5
    %v514 = vtanh.pop %v513
    %v515 = vadd.f32 %v514, 1.0
    %v516 = vmul.f32 %v515, 0.5
    %v517 = vpack.c.bf16 %v516, %v516
    %s518 = scalar_lea.vmem [#allocation4], 256
    %v519 = vld [vmem:[%s518] sm:$0xf]
    %v520 = vld [vmem:[%s518 + $0x4] sm:$0xf]
    %v521 = vld [vmem:[%s518 + $0x8] sm:$0xf]
    %v522 = vld [vmem:[%s518 + $0xc] sm:$0xf]
    %v523 = vld [vmem:[%s518 + $0x10] sm:$0xf]
    %v524 = vld [vmem:[%s518 + $0x14] sm:$0xf]
    %v525 = vld [vmem:[%s518 + $0x18] sm:$0xf]
    %v526 = vld [vmem:[%s518 + $0x1c] sm:$0xf]
    %v527 = vld [vmem:[%s518 + $0x20] sm:$0xf]
    %v528 = vld [vmem:[%s518 + $0x24] sm:$0xf]
    %v529 = vld [vmem:[%s518 + $0x28] sm:$0xf]
    %v530 = vld [vmem:[%s518 + $0x2c] sm:$0xf]
    %v531 = vld [vmem:[%s518 + $0x30] sm:$0xf]
    %v532 = vld [vmem:[%s518 + $0x34] sm:$0xf]
    %v533 = vld [vmem:[%s518 + $0x38] sm:$0xf]
    %v534 = vld [vmem:[%s518 + $0x3c] sm:$0xf]
    %v535 = vld [vmem:[#allocation6 + $0x4] sm:$0x1]
    %v536 = vlaneseq
    %v537 = vshrl.u32 %v536, 7
    %v538 = vsub.s32 0, %v537
    %v539 = vrot.slane %v535, %v538
    %v556 = vunpack.c.l.b16 %v519
    %v557 = vunpack.c.l.b16 %v520
    %v558 = vunpack.c.l.b16 %v521
    %v559 = vunpack.c.l.b16 %v522
    %v560 = vunpack.c.l.b16 %v523
    %v561 = vunpack.c.l.b16 %v524
    %v562 = vunpack.c.l.b16 %v525
    %v563 = vunpack.c.l.b16 %v526
    %v564 = vunpack.c.l.b16 %v527
    %v565 = vunpack.c.l.b16 %v528
    %v566 = vunpack.c.l.b16 %v529
    %v567 = vunpack.c.l.b16 %v530
    %v568 = vunpack.c.l.b16 %v531
    %v569 = vunpack.c.l.b16 %v532
    %v570 = vunpack.c.l.b16 %v533
    %v571 = vunpack.c.l.b16 %v534
    %v572 = vpack.c.b16 %v557, %v556
    %v573 = vpack.c.b16 %v559, %v558
    %v574 = vpack.c.b16 %v561, %v560
    %v575 = vpack.c.b16 %v563, %v562
    %v576 = vpack.c.b16 %v565, %v564
    %v577 = vpack.c.b16 %v567, %v566
    %v578 = vpack.c.b16 %v569, %v568
    %v579 = vpack.c.b16 %v571, %v570
    %588 = vmatprep.subr.bf16.mxu0 0
    %589 = vmatpush1.bf16.msra.mxu0 %v572
    %590 = vmatprep.subr.bf16.mxu0 0
    %591 = vmatpush1.bf16.msra.mxu0 %v573
    %592 = vmatprep.subr.bf16.mxu0 0
    %593 = vmatpush1.bf16.msra.mxu0 %v574
    %594 = vmatprep.subr.bf16.mxu0 0
    %595 = vmatpush1.bf16.msra.mxu0 %v575
    %596 = vmatprep.subr.bf16.mxu0 0
    %597 = vmatpush1.bf16.msra.mxu0 %v576
    %598 = vmatprep.subr.bf16.mxu0 0
    %599 = vmatpush1.bf16.msra.mxu0 %v577
    %600 = vmatprep.subr.bf16.mxu0 0
    %601 = vmatpush1.bf16.msra.mxu0 %v578
    %602 = vmatprep.subr.bf16.mxu0 0
    %603 = vmatpush1.bf16.msra.mxu0 %v579
    %604 = vmatprep.subr.bf16.mxu0 0
    %605 = vmatpush1.bf16.msra.mxu0 0
    %606 = vmatprep.subr.bf16.mxu0 0
    %607 = vmatpush1.bf16.msra.mxu0 0
    %608 = vmatprep.subr.bf16.mxu0 0
    %609 = vmatpush1.bf16.msra.mxu0 0
    %610 = vmatprep.subr.bf16.mxu0 0
    %611 = vmatpush1.bf16.msra.mxu0 0
    %612 = vmatprep.subr.bf16.mxu0 0
    %613 = vmatpush1.bf16.msra.mxu0 0
    %614 = vmatprep.subr.bf16.mxu0 0
    %615 = vmatpush1.bf16.msra.mxu0 0
    %616 = vmatprep.subr.bf16.mxu0 0
    %617 = vmatpush1.bf16.msra.mxu0 0
    %618 = vmatprep.subr.bf16.mxu0 0
    %619 = vmatpush1.bf16.msra.mxu0 0
    %620 = vmatprep.mubr.bf16.mxu0 0
    %621 = vmatmul.mubr.bf16.gmra.mrb[0].mxu0 %v517
    %v622 = vpop.f32.mrb[0].mxu0
    %v623 = vadd.f32 %v539, %v622
    %v624 = vpop.f32.mrb[0].mxu0
    %v625 = vpop.f32.mrb[0].mxu0
    %v626 = vpop.f32.mrb[0].mxu0
    %627 = vdwg.mxu0
    %v628 = vlaneseq
    %v629 = vand.u32 %v628, 127
    %vm630 = vcmp.lt.s32.totalorder %v629, 4
    %v631 = vsel %vm630, 1, 0
    %vm632 = vcmp.eq.s32.totalorder %v631, 1
    %v633 = vsel %vm632, %v623, -1e+30
    %634 = vmax.xlane.f32.xlu0 %v633
    %v635 = vpop.xlane.xlu0 %634
    %v636 = vsub.f32 %v633, %v635
    %v637 = vmul.f32 %v636, 1.442695
    %v638 = vpow.pop %v637
    %639 = vadd.xlane.f32.xlu0 %v638
    %v640 = vpop.xlane.xlu0 %639
    %v641 = vrcp.pop %v640
    %v642 = vmul.f32 %v638, %v641
    %vm643 = vcmask 31744
    %644 = vst.msk [vmem:[%s3] sm:$0xff] %vm643, %v642
    // Predicated region
    $region26: #{tpu_custom_call.1} parent=1 // pred_check
      _
    $region27: #{tpu_custom_call.1} parent=1 // pred_check_branch
      %646 = sbr.rel (0) target = $region29
    $region28: #{tpu_custom_call.1} parent=1 // pred_region
      _
    $region29: #{tpu_custom_call.1} parent=1 // pred_fallthru
      _
    // Predicated region
    $region30: #{tpu_custom_call.1} parent=1 // pred_check
      _
    $region31: #{tpu_custom_call.1} parent=1 // pred_check_branch
      %648 = sbr.rel (0) target = $region33
    $region32: #{tpu_custom_call.1} parent=1 // pred_region
      _
    $region33: #{tpu_custom_call.1} parent=1 // pred_fallthru
      _
    %649 = vsyncpa [#allocation3], 1
    %650 = vsyncpa [#allocation5], 1

</llo_original>
